<compile_context>
chip_gen: v5e
topology: v5e:2x2
jax: 0.10.0
libtpu: 0.0.40
codegen_flags: <defaults>
</compile_context>

<pallas_src>
import jax
import jax.numpy as jnp
from jax.experimental import pallas as pl
from jax.experimental.pallas import tpu as pltpu

# Finite "-inf": keeps partially-masked rows exact while avoiding NaN propagation in
# the online-softmax recurrence. (Behavioral difference vs masked_fill(-inf) only for
# rows that are fully masked across ALL kv tiles; never happens for causal masks.)
_MASK_VALUE = -1e30


# ---------------------------------------------------------------------------
# Stage 1: fused q/k/v projection (each sequence row projected exactly once).
# ---------------------------------------------------------------------------
def _proj_kernel(x_ref, wq_ref, wk_ref, wv_ref, q_ref, k_ref, v_ref):
    x = x_ref[...]
    q_ref[...] = jnp.dot(x, wq_ref[...],
                         preferred_element_type=jnp.float32).astype(q_ref.dtype)
    k_ref[...] = jnp.dot(x, wk_ref[...],
                         preferred_element_type=jnp.float32).astype(k_ref.dtype)
    v_ref[...] = jnp.dot(x, wv_ref[...],
                         preferred_element_type=jnp.float32).astype(v_ref.dtype)


def _project_qkv(x2d, wq_t, wk_t, wv_t, *, block_rows, out_dtype):
    N, C = x2d.shape
    H = wq_t.shape[1]
    tp = min(block_rows, N)
    if N % tp:
        tp = N  # TODO(synk): pad instead for very large, non-divisible row counts.

    spec_x = pl.BlockSpec((tp, C), lambda i: (i, 0))
    spec_w = pl.BlockSpec((C, H), lambda i: (0, 0))
    spec_o = pl.BlockSpec((tp, H), lambda i: (i, 0))

    return pl.pallas_call(
        _proj_kernel,
        out_shape=tuple(jax.ShapeDtypeStruct((N, H), out_dtype) for _ in range(3)),
        grid=(N // tp,),
        in_specs=[spec_x, spec_w, spec_w, spec_w],
        out_specs=(spec_o, spec_o, spec_o),
        compiler_params=pltpu.CompilerParams(
            dimension_semantics=("parallel",)),
    )(x2d, wq_t, wk_t, wv_t)


# ---------------------------------------------------------------------------
# Stage 2: flash-style attention over precomputed q/k/v.
# ---------------------------------------------------------------------------
def _make_flash_kernel(mask_mode, tq, tk, compute_dtype, approx_recip):
    """mask_mode in {"none", "causal", "dense"}."""

    def kernel(*refs):
        if mask_mode == "dense":
            q_ref, k_ref, v_ref, mask_ref, o_ref, m_s, l_s, acc_s = refs
        else:
            q_ref, k_ref, v_ref, o_ref, m_s, l_s, acc_s = refs
            mask_ref = None

        qi = pl.program_id(1)
        ki = pl.program_id(2)

        @pl.when(ki == 0)
        def _init():
            m_s[...] = jnp.full(m_s.shape, -jnp.inf, dtype=m_s.dtype)
            l_s[...] = jnp.zeros(l_s.shape, dtype=l_s.dtype)
            acc_s[...] = jnp.zeros(acc_s.shape, dtype=acc_s.dtype)

        def _attend():
            # Scores: contract head dims directly (no k transpose / XLU traffic).
            s = jax.lax.dot_general(
                q_ref[...], k_ref[...],
                dimension_numbers=(((1,), (1,)), ((), ())),
                preferred_element_type=jnp.float32)            # (tq, tk) f32

            if mask_mode == "causal":
                # In-kernel additive causal mask: cheap VPU iota/compare, no HBM mask.
                row = qi * tq + jax.lax.broadcasted_iota(jnp.int32, (tq, tk), 0)
                col = ki * tk + jax.lax.broadcasted_iota(jnp.int32, (tq, tk), 1)
                s = jnp.where(col <= row, s, jnp.float32(_MASK_VALUE))
            elif mask_mode == "dense":
                s = s + mask_ref[...].astype(jnp.float32)      # additive 0 / -1e30

            # Online softmax update (f32 statistics).
            m_prev = m_s[...]
            m_new = jnp.maximum(m_prev, jnp.max(s, axis=-1, keepdims=True))
            alpha = jnp.exp(m_prev - m_new)
            p = jnp.exp(s - m_new)
            l_s[...] = alpha * l_s[...] + jnp.sum(p, axis=-1, keepdims=True)
            pv = jnp.dot(p.astype(compute_dtype), v_ref[...],
                         preferred_element_type=jnp.float32)   # (tq, H)
            acc_s[...] = alpha * acc_s[...] + pv
            m_s[...] = m_new

        if mask_mode == "causal":
            # Skip kv tiles that lie entirely above the diagonal (~2x less work/DMA).
            pl.when(ki * tk <= qi * tq + (tq - 1))(_attend)
        else:
            _attend()

        @pl.when(ki == pl.num_programs(2) - 1)
        def _finalize():
            inv_l = pl.reciprocal(l_s[...], approx=approx_recip)
            o_ref[...] = (acc_s[...] * inv_l).astype(o_ref.dtype)

    return kernel


def head_forward(x, w_key, w_query, w_value, mask=None, *, causal=False,
                 block_q=256, block_k=256, block_proj=512,
                 compute_dtype=jnp.bfloat16):
    """Pallas implementation of Head.forward (eval mode).

    x:                  [B, T, C]
    w_key/query/value:  [H, C]   (PyTorch nn.Linear weight layout)
    mask:               optional [T, T]; positions where mask == 0 are masked out
    causal:             if True, the causal mask is generated in-kernel (mask ignored)
    returns:            [B, T, H] with x.dtype

    On v5e prefer block_q=block_k=128 (128-wide MXU); 256 is the v6e/v7x default.
    """
    B, T, C = x.shape
    H = w_key.shape[0]
    scale = float(H) ** -0.5

    tq = min(block_q, T)
    tk = min(block_k, T)
    if T % tq or T % tk:
        raise ValueError("T must be divisible by the q/k tile sizes")

    # PyTorch nn.Linear weight [H, C] -> [C, H]; fold softmax scale into W_q (free).
    wq_t = (w_query.T * scale).astype(compute_dtype)
    wk_t = w_key.T.astype(compute_dtype)
    wv_t = w_value.T.astype(compute_dtype)

    # ---- Stage 1: project q/k/v exactly once per row. -----------------------
    x2d = x.reshape(B * T, C).astype(compute_dtype)
    q2d, k2d, v2d = _project_qkv(x2d, wq_t, wk_t, wv_t,
                                 block_rows=block_proj, out_dtype=compute_dtype)
    q = q2d.reshape(B, T, H)
    k = k2d.reshape(B, T, H)
    v = v2d.reshape(B, T, H)

    # ---- Stage 2: flash attention. ------------------------------------------
    if causal:
        mask_mode = "causal"
    elif mask is not None:
        mask_mode = "dense"
    else:
        mask_mode = "none"

    def q_map(b, qi, ki):
        return (b, qi, 0)

    if mask_mode == "causal":
        # Clamp so skipped (fully masked) kv tiles never trigger fresh DMA.
        def kv_map(b, qi, ki):
            return (b, jnp.minimum(ki, (qi * tq + tq - 1) // tk), 0)
    else:
        def kv_map(b, qi, ki):
            return (b, ki, 0)

    operands = [q, k, v]
    in_specs = [
        pl.BlockSpec((None, tq, H), q_map),    # q tile: resident across the kv sweep
        pl.BlockSpec((None, tk, H), kv_map),   # k tile
        pl.BlockSpec((None, tk, H), kv_map),   # v tile
    ]
    if mask_mode == "dense":
        # Additive mask in bf16: 0 where attended, -1e30 where masked (finite).
        add_mask = jnp.where(mask == 0, _MASK_VALUE, 0.0).astype(jnp.bfloat16)
        operands.append(add_mask)
        in_specs.append(pl.BlockSpec((tq, tk), lambda b, qi, ki: (qi, ki)))

    approx_recip = compute_dtype != jnp.float32
    kernel = _make_flash_kernel(mask_mode, tq, tk, compute_dtype, approx_recip)

    return pl.pallas_call(
        kernel,
        out_shape=jax.ShapeDtypeStruct((B, T, H), x.dtype),
        grid_spec=pltpu.PrefetchScalarGridSpec(
            num_scalar_prefetch=0,
            grid=(B, T // tq, T // tk),          # kv (reduction) axis last
            in_specs=in_specs,
            out_specs=pl.BlockSpec((None, tq, H), q_map),
            scratch_shapes=[
                pltpu.VMEM((tq, 1), jnp.float32),   # running max m
                pltpu.VMEM((tq, 1), jnp.float32),   # running sum l
                pltpu.VMEM((tq, H), jnp.float32),   # output accumulator
            ],
        ),
        compiler_params=pltpu.CompilerParams(
            dimension_semantics=("parallel", "parallel", "arbitrary"),
            # Raise v5e's 16 MiB scoped default; tiny tiles here leave ample headroom
            # against v7x's 64 MiB physical VMEM per TC.
            vmem_limit_bytes=32 * 1024 * 1024,
        ),
    )(*operands)


# ---------------------------------------------------------------------------
# Reference + self-test.
# ---------------------------------------------------------------------------
def _reference(x, w_key, w_query, w_value, mask, head_size):
    k = x @ w_key.T
    q = x @ w_query.T
    v = x @ w_value.T
    att = (q @ jnp.swapaxes(k, -2, -1)) * (head_size ** -0.5)
    if mask is not None:
        att = jnp.where(mask[None] == 0, -jnp.inf, att)
    att = jax.nn.softmax(att, axis=-1)
    return att @ v


if __name__ == "__main__":
    # Small shapes consistent with the module: B=2, T=8, C(embed)=32, H(head)=16.
    B, T, C, H = 2, 8, 32, 16

    key = jax.random.PRNGKey(0)
    kx, kk, kq, kv = jax.random.split(key, 4)

    x = jax.random.normal(kx, (B, T, C), dtype=jnp.float32)
    # PyTorch nn.Linear weight shape: [out, in].
    w_key = jax.random.normal(kk, (H, C), dtype=jnp.float32) * (C ** -0.5)
    w_query = jax.random.normal(kq, (H, C), dtype=jnp.float32) * (C ** -0.5)
    w_value = jax.random.normal(kv, (H, C), dtype=jnp.float32) * (C ** -0.5)

    tril = jnp.tril(jnp.ones((T, T), dtype=jnp.int32))
    ref_causal = _reference(x, w_key, w_query, w_value, tril, H)
    ref_full = _reference(x, w_key, w_query, w_value, None, H)

    # 1) Exact-math check: f32 compute, in-kernel causal mask + tile skipping.
    out_f32 = jax.block_until_ready(
        head_forward(x, w_key, w_query, w_value, causal=True,
                     compute_dtype=jnp.float32))
    assert out_f32.shape == (B, T, H)
    assert jnp.allclose(out_f32, ref_causal, atol=1e-4, rtol=1e-4)

    # 2) Performance path: bf16 MXU inputs, f32 accumulation (loose tolerance).
    out_bf16 = jax.block_until_ready(
        head_forward(x, w_key, w_query, w_value, causal=True))
    assert out_bf16.shape == (B, T, H)
    assert bool(jnp.all(jnp.isfinite(out_bf16)))
    assert jnp.allclose(out_bf16, ref_causal, atol=5e-2, rtol=5e-2)

    # 3) Arbitrary-mask path (shipped additive bf16 mask) with the same tril mask.
    out_mask = jax.block_until_ready(
        head_forward(x, w_key, w_query, w_value, mask=tril,
                     compute_dtype=jnp.float32))
    assert jnp.allclose(out_mask, ref_causal, atol=1e-4, rtol=1e-4)

    # 4) No-mask path (mask operand dropped entirely).
    out_nomask = jax.block_until_ready(
        head_forward(x, w_key, w_query, w_value, compute_dtype=jnp.float32))
    assert jnp.allclose(out_nomask, ref_full, atol=1e-4, rtol=1e-4)

    print("KERNEL_OK")
</pallas_src>

<mosaic_0001>
module attributes {stable_mosaic.version = 11 : i64} {
  func.func @_proj_kernel(%arg0: i32, %arg1: memref<16x32xf32, #tpu.memory_space<vmem>>, %arg2: memref<32x16xf32, #tpu.memory_space<vmem>>, %arg3: memref<32x16xf32, #tpu.memory_space<vmem>>, %arg4: memref<32x16xf32, #tpu.memory_space<vmem>>, %arg5: memref<16x16xf32, #tpu.memory_space<vmem>>, %arg6: memref<16x16xf32, #tpu.memory_space<vmem>>, %arg7: memref<16x16xf32, #tpu.memory_space<vmem>>) attributes {dimension_semantics = [#tpu.dimension_semantics<parallel>], iteration_bounds = array<i64: 1>, scalar_prefetch = 0 : i64, scratch_operands = 0 : i64, tpu.core_type = #tpu.core_type<tc>, window_params = [{transform_indices = @transform_0, window_bounds = array<i64: 16, 32>}, {pipeline_mode = #tpu.pipeline_mode<synchronous>, transform_indices = @transform_1, window_bounds = array<i64: 32, 16>}, {pipeline_mode = #tpu.pipeline_mode<synchronous>, transform_indices = @transform_2, window_bounds = array<i64: 32, 16>}, {pipeline_mode = #tpu.pipeline_mode<synchronous>, transform_indices = @transform_3, window_bounds = array<i64: 32, 16>}, {transform_indices = @transform_4, window_bounds = array<i64: 16, 16>}, {transform_indices = @transform_5, window_bounds = array<i64: 16, 16>}, {transform_indices = @transform_6, window_bounds = array<i64: 16, 16>}]} {
    %c0 = arith.constant 0 : index
    %c0_0 = arith.constant 0 : index
    %0 = vector.load %arg1[%c0, %c0_0] : memref<16x32xf32, #tpu.memory_space<vmem>>, vector<16x32xf32>
    %c0_1 = arith.constant 0 : index
    %c0_2 = arith.constant 0 : index
    %1 = vector.load %arg2[%c0_1, %c0_2] : memref<32x16xf32, #tpu.memory_space<vmem>>, vector<32x16xf32>
    %cst = arith.constant dense<0.000000e+00> : vector<16x16xf32>
    %2 = tpu.matmul %0, %1, %cst {dimension_numbers = #tpu.dot_dimension_numbers<[1], [0], [0], [1], [0, 0, 1, 1], [], []>} : vector<16x32xf32>, vector<32x16xf32>, vector<16x16xf32> -> vector<16x16xf32>
    %c0_3 = arith.constant 0 : index
    %c0_4 = arith.constant 0 : index
    %3 = vector.load %arg5[%c0_3, %c0_4] : memref<16x16xf32, #tpu.memory_space<vmem>>, vector<16x16xf32>
    tpu.vector_store %arg5[%c0_3, %c0_4], %2 {strides = array<i32>} : memref<16x16xf32, #tpu.memory_space<vmem>>, vector<16x16xf32>,
    %c0_5 = arith.constant 0 : index
    %c0_6 = arith.constant 0 : index
    %4 = vector.load %arg3[%c0_5, %c0_6] : memref<32x16xf32, #tpu.memory_space<vmem>>, vector<32x16xf32>
    %cst_7 = arith.constant dense<0.000000e+00> : vector<16x16xf32>
    %5 = tpu.matmul %0, %4, %cst_7 {dimension_numbers = #tpu.dot_dimension_numbers<[1], [0], [0], [1], [0, 0, 1, 1], [], []>} : vector<16x32xf32>, vector<32x16xf32>, vector<16x16xf32> -> vector<16x16xf32>
    %c0_8 = arith.constant 0 : index
    %c0_9 = arith.constant 0 : index
    %6 = vector.load %arg6[%c0_8, %c0_9] : memref<16x16xf32, #tpu.memory_space<vmem>>, vector<16x16xf32>
    tpu.vector_store %arg6[%c0_8, %c0_9], %5 {strides = array<i32>} : memref<16x16xf32, #tpu.memory_space<vmem>>, vector<16x16xf32>,
    %c0_10 = arith.constant 0 : index
    %c0_11 = arith.constant 0 : index
    %7 = vector.load %arg4[%c0_10, %c0_11] : memref<32x16xf32, #tpu.memory_space<vmem>>, vector<32x16xf32>
    %cst_12 = arith.constant dense<0.000000e+00> : vector<16x16xf32>
    %8 = tpu.matmul %0, %7, %cst_12 {dimension_numbers = #tpu.dot_dimension_numbers<[1], [0], [0], [1], [0, 0, 1, 1], [], []>} : vector<16x32xf32>, vector<32x16xf32>, vector<16x16xf32> -> vector<16x16xf32>
    %c0_13 = arith.constant 0 : index
    %c0_14 = arith.constant 0 : index
    %9 = vector.load %arg7[%c0_13, %c0_14] : memref<16x16xf32, #tpu.memory_space<vmem>>, vector<16x16xf32>
    tpu.vector_store %arg7[%c0_13, %c0_14], %8 {strides = array<i32>} : memref<16x16xf32, #tpu.memory_space<vmem>>, vector<16x16xf32>,
    return
  }
  func.func @transform_0(%arg0: i32) -> (i32, i32) {
    %c0_i32 = arith.constant 0 : i32
    %c0_i32_0 = arith.constant 0 : i32
    return %arg0, %c0_i32 : i32, i32
  }
  func.func @transform_1(%arg0: i32) -> (i32, i32) {
    %c0_i32 = arith.constant 0 : i32
    %c0_i32_0 = arith.constant 0 : i32
    %c0_i32_1 = arith.constant 0 : i32
    return %c0_i32, %c0_i32_0 : i32, i32
  }
  func.func @transform_2(%arg0: i32) -> (i32, i32) {
    %c0_i32 = arith.constant 0 : i32
    %c0_i32_0 = arith.constant 0 : i32
    %c0_i32_1 = arith.constant 0 : i32
    return %c0_i32, %c0_i32_0 : i32, i32
  }
  func.func @transform_3(%arg0: i32) -> (i32, i32) {
    %c0_i32 = arith.constant 0 : i32
    %c0_i32_0 = arith.constant 0 : i32
    %c0_i32_1 = arith.constant 0 : i32
    return %c0_i32, %c0_i32_0 : i32, i32
  }
  func.func @transform_4(%arg0: i32) -> (i32, i32) {
    %c0_i32 = arith.constant 0 : i32
    %c0_i32_0 = arith.constant 0 : i32
    return %arg0, %c0_i32 : i32, i32
  }
  func.func @transform_5(%arg0: i32) -> (i32, i32) {
    %c0_i32 = arith.constant 0 : i32
    %c0_i32_0 = arith.constant 0 : i32
    return %arg0, %c0_i32 : i32, i32
  }
  func.func @transform_6(%arg0: i32) -> (i32, i32) {
    %c0_i32 = arith.constant 0 : i32
    %c0_i32_0 = arith.constant 0 : i32
    return %arg0, %c0_i32 : i32, i32
  }
}

</mosaic_0001>

<llo_original>
// kernel: tpu_custom_call.1
$region0: #{tpu_custom_call.1}
  #allocation0 [shape = 'u32[]', space=smem, size = 0x4, offset = 0x4, fixed_abs, tag = 'smem constant byte address 0x4 - core index']
  #allocation1 [shape = 'u32[72,128]{1,0:T(1,128)}', space=vmem, size = 0x9000, scoped, tag = 'internal scratch']
  %s0 = inlined_call_operand.vmem [shape: f32[16,32], index: 0, kind: input, shape index: {}]
  %s1 = inlined_call_operand.vmem [shape: f32[32,16], index: 1, kind: input, shape index: {}]
  %s2 = inlined_call_operand.vmem [shape: f32[32,16], index: 2, kind: input, shape index: {}]
  %s3 = inlined_call_operand.vmem [shape: f32[32,16], index: 3, kind: input, shape index: {}]
  %s4 = inlined_call_operand.hbm [shape: f32[16,16], index: 4, kind: output, shape index: {0}]
  %s5 = inlined_call_operand.hbm [shape: f32[16,16], index: 5, kind: output, shape index: {1}]
  %s6 = inlined_call_operand.hbm [shape: f32[16,16], index: 6, kind: output, shape index: {2}]
  %7 = xla_tuple %s4, %s5, %s6
  %s8 = sld [smem:[#allocation0]]
  $region42: #{tpu_custom_call.1} parent=0
    _
  %s10 = ssub.s32 1, %s8
  %s11 = scalar_select 0, %s10, %s8
  $region1: #{tpu_custom_call.1} parent=0
    #allocation2 [shape = 'u8[8192]{0}', space=vmem, size = 0x2000, scoped, tag = 'output window, operand 0, single buffered']
    #allocation3 [shape = 's32[1]{0}', space=sflag, size = 0x4, scoped, tag = 'scoped memory for tpu_custom_call.1']
    #allocation4 [shape = 'u8[8192]{0}', space=vmem, size = 0x2000, scoped, tag = 'output window, operand 1, single buffered']
    #allocation5 [shape = 's32[1]{0}', space=sflag, size = 0x4, scoped, tag = 'scoped memory for tpu_custom_call.1']
    #allocation6 [shape = 'u8[8192]{0}', space=vmem, size = 0x2000, scoped, tag = 'output window, operand 2, single buffered']
    %12 = vsyncpa [#allocation3], 0
    %13 = vsyncpa [#allocation5], 0
    // Predicated region
    $region2: #{tpu_custom_call.1} parent=1 // pred_check
      _
    $region3: #{tpu_custom_call.1} parent=1 // pred_check_branch
      %15 = sbr.rel (0) target = $region5
    $region4: #{tpu_custom_call.1} parent=1 // pred_region
      _
    $region5: #{tpu_custom_call.1} parent=1 // pred_fallthru
      _
    // Predicated region
    $region6: #{tpu_custom_call.1} parent=1 // pred_check
      _
    $region7: #{tpu_custom_call.1} parent=1 // pred_check_branch
      %17 = sbr.rel (0) target = $region9
    $region8: #{tpu_custom_call.1} parent=1 // pred_region
      _
    $region9: #{tpu_custom_call.1} parent=1 // pred_fallthru
      _
    // Predicated region
    $region10: #{tpu_custom_call.1} parent=1 // pred_check
      _
    $region11: #{tpu_custom_call.1} parent=1 // pred_check_branch
      %19 = sbr.rel (0) target = $region13
    $region12: #{tpu_custom_call.1} parent=1 // pred_region
      _
    $region13: #{tpu_custom_call.1} parent=1 // pred_fallthru
      _
    // Predicated region
    $region14: #{tpu_custom_call.1} parent=1 // pred_check
      _
    $region15: #{tpu_custom_call.1} parent=1 // pred_check_branch
      %21 = sbr.rel (0) target = $region17
    $region16: #{tpu_custom_call.1} parent=1 // pred_region
      _
    $region17: #{tpu_custom_call.1} parent=1 // pred_fallthru
      _
    %v22 = vld [vmem:[%s0] sm:$0xff]
    %v23 = vld [vmem:[%s0 + $0x8] sm:$0xff]
    %v24 = vld [vmem:[%s1] sm:$0xff]
    %v25 = vld [vmem:[%s1 + $0x8] sm:$0xff]
    %v26 = vld [vmem:[%s1 + $0x10] sm:$0xff]
    %v27 = vld [vmem:[%s1 + $0x18] sm:$0xff]
    %vm28 = vcmask 261120
    %v30 = vsel %vm28, %v22, 0
    %v33 = vsel %vm28, %v23, 0
    %35 = vmatpush.msra.mxu0 0.0
    %36 = vmatpush.msra.mxu0 0.0
    %37 = vmatpush.msra.mxu0 0.0
    %38 = vmatpush.msra.mxu0 0.0
    %39 = vmatpush.msra.mxu0 0.0
    %40 = vmatpush.msra.mxu0 0.0
    %41 = vmatpush.msra.mxu0 0.0
    %42 = vmatpush.msra.mxu0 0.0
    %43 = vmatpush.msra.mxu0 0.0
    %44 = vmatpush.msra.mxu0 0.0
    %45 = vmatpush.msra.mxu0 0.0
    %46 = vmatpush.msra.mxu0 0.0
    %47 = vmatpush.msra.mxu0 %v27
    %48 = vmatpush.msra.mxu0 %v26
    %49 = vmatpush.msra.mxu0 %v25
    %50 = vmatpush.msra.mxu0 %v24
    %51 = vmatmul.f32.gmra.mxu0 %v30
    %v52 = vpop.f32.mrf.mxu0
    %v53 = vadd.f32 0.0, %v52
    %54 = vmatmul.f32.gmra.mxu0 %v33
    %v55 = vpop.f32.mrf.mxu0
    %v56 = vadd.f32 0.0, %v55
    %57 = vdwg.mxu0
    %vm58 = vcmask 130048
    %59 = vst.msk [vmem:[#allocation2] sm:$0xff] %vm58, %v53
    %60 = vst.msk [vmem:[#allocation2 + $0x8] sm:$0xff] %vm58, %v56
    %v61 = vld [vmem:[%s2] sm:$0xff]
    %v62 = vld [vmem:[%s2 + $0x8] sm:$0xff]
    %v63 = vld [vmem:[%s2 + $0x10] sm:$0xff]
    %v64 = vld [vmem:[%s2 + $0x18] sm:$0xff]
    %65 = vmatpush.msra.mxu0 0.0
    %66 = vmatpush.msra.mxu0 0.0
    %67 = vmatpush.msra.mxu0 0.0
    %68 = vmatpush.msra.mxu0 0.0
    %69 = vmatpush.msra.mxu0 0.0
    %70 = vmatpush.msra.mxu0 0.0
    %71 = vmatpush.msra.mxu0 0.0
    %72 = vmatpush.msra.mxu0 0.0
    %73 = vmatpush.msra.mxu0 0.0
    %74 = vmatpush.msra.mxu0 0.0
    %75 = vmatpush.msra.mxu0 0.0
    %76 = vmatpush.msra.mxu0 0.0
    %77 = vmatpush.msra.mxu0 %v64
    %78 = vmatpush.msra.mxu0 %v63
    %79 = vmatpush.msra.mxu0 %v62
    %80 = vmatpush.msra.mxu0 %v61
    %81 = vmatmul.f32.gmra.mxu0 %v30
    %v82 = vpop.f32.mrf.mxu0
    %v83 = vadd.f32 0.0, %v82
    %84 = vmatmul.f32.gmra.mxu0 %v33
    %v85 = vpop.f32.mrf.mxu0
    %v86 = vadd.f32 0.0, %v85
    %87 = vdwg.mxu0
    %88 = vst.msk [vmem:[#allocation4] sm:$0xff] %vm58, %v83
    %89 = vst.msk [vmem:[#allocation4 + $0x8] sm:$0xff] %vm58, %v86
    %v90 = vld [vmem:[%s3] sm:$0xff]
    %v91 = vld [vmem:[%s3 + $0x8] sm:$0xff]
    %v92 = vld [vmem:[%s3 + $0x10] sm:$0xff]
    %v93 = vld [vmem:[%s3 + $0x18] sm:$0xff]
    %94 = vmatpush.msra.mxu0 0.0
    %95 = vmatpush.msra.mxu0 0.0
    %96 = vmatpush.msra.mxu0 0.0
    %97 = vmatpush.msra.mxu0 0.0
    %98 = vmatpush.msra.mxu0 0.0
    %99 = vmatpush.msra.mxu0 0.0
    %100 = vmatpush.msra.mxu0 0.0
    %101 = vmatpush.msra.mxu0 0.0
    %102 = vmatpush.msra.mxu0 0.0
    %103 = vmatpush.msra.mxu0 0.0
    %104 = vmatpush.msra.mxu0 0.0
    %105 = vmatpush.msra.mxu0 0.0
    %106 = vmatpush.msra.mxu0 %v93
    %107 = vmatpush.msra.mxu0 %v92
    %108 = vmatpush.msra.mxu0 %v91
    %109 = vmatpush.msra.mxu0 %v90
    %110 = vmatmul.f32.gmra.mxu0 %v30
    %v111 = vpop.f32.mrf.mxu0
    %v112 = vadd.f32 0.0, %v111
    %113 = vmatmul.f32.gmra.mxu0 %v33
    %v114 = vpop.f32.mrf.mxu0
    %v115 = vadd.f32 0.0, %v114
    %116 = vdwg.mxu0
    %117 = vst.msk [vmem:[#allocation6] sm:$0xff] %vm58, %v112
    %118 = vst.msk [vmem:[#allocation6 + $0x8] sm:$0xff] %vm58, %v115
    // Predicated region
    $region18: #{tpu_custom_call.1} parent=1 // pred_check
      _
    $region19: #{tpu_custom_call.1} parent=1 // pred_check_branch
      %120 = sbr.rel (0) target = $region21
    $region20: #{tpu_custom_call.1} parent=1 // pred_region
      %122 = vsyncadd [#allocation3], 0
      %s123 = sshll.u32 [#allocation2], 4
      %s124 = int_to_ptr.vmem [resolvable:$true] %s123
      %s125 = sshll.u32 %s4, 4
      %s126 = int_to_ptr.hbm [resolvable:$true] %s125
      %131 = dma.vmem_to_hbm [thread:$0]  %s124, 256, %s126, [#allocation3], 128, 128, 8
    $region21: #{tpu_custom_call.1} parent=1 // pred_fallthru
      _
    // Predicated region
    $region22: #{tpu_custom_call.1} parent=1 // pred_check
      _
    $region23: #{tpu_custom_call.1} parent=1 // pred_check_branch
      %133 = sbr.rel (0) target = $region25
    $region24: #{tpu_custom_call.1} parent=1 // pred_region
      %135 = vsyncadd [#allocation5], 0
      %s136 = sshll.u32 [#allocation4], 4
      %s137 = int_to_ptr.vmem [resolvable:$true] %s136
      %s138 = sshll.u32 %s5, 4
      %s139 = int_to_ptr.hbm [resolvable:$true] %s138
      %144 = dma.vmem_to_hbm [thread:$0]  %s137, 256, %s139, [#allocation5], 128, 128, 8
    $region25: #{tpu_custom_call.1} parent=1 // pred_fallthru
      _
    // Predicated region
    $region26: #{tpu_custom_call.1} parent=1 // pred_check
      _
    $region27: #{tpu_custom_call.1} parent=1 // pred_check_branch
      %146 = sbr.rel (0) target = $region29
    $region28: #{tpu_custom_call.1} parent=1 // pred_region
      %148 = vsyncadd [#allocation5], 0
      %s149 = sshll.u32 [#allocation6], 4
      %s150 = int_to_ptr.vmem [resolvable:$true] %s149
      %s151 = sshll.u32 %s6, 4
      %s152 = int_to_ptr.hbm [resolvable:$true] %s151
      %157 = dma.vmem_to_hbm [thread:$0]  %s150, 256, %s152, [#allocation5], 128, 128, 8
    $region29: #{tpu_custom_call.1} parent=1 // pred_fallthru
      _
    // Predicated region
    $region30: #{tpu_custom_call.1} parent=1 // pred_check
      _
    $region31: #{tpu_custom_call.1} parent=1 // pred_check_branch
      %159 = sbr.rel (0) target = $region33
    $region32: #{tpu_custom_call.1} parent=1 // pred_region
      %161 = dma.done [#allocation3], 256
    $region33: #{tpu_custom_call.1} parent=1 // pred_fallthru
      _
    // Predicated region
    $region34: #{tpu_custom_call.1} parent=1 // pred_check
      _
    $region35: #{tpu_custom_call.1} parent=1 // pred_check_branch
      %163 = sbr.rel (0) target = $region37
    $region36: #{tpu_custom_call.1} parent=1 // pred_region
      %165 = dma.done [#allocation5], 256
    $region37: #{tpu_custom_call.1} parent=1 // pred_fallthru
      _
    // Predicated region
    $region38: #{tpu_custom_call.1} parent=1 // pred_check
      _
    $region39: #{tpu_custom_call.1} parent=1 // pred_check_branch
      %167 = sbr.rel (0) target = $region41
    $region40: #{tpu_custom_call.1} parent=1 // pred_region
      %169 = dma.done [#allocation5], 256
    $region41: #{tpu_custom_call.1} parent=1 // pred_fallthru
      _
    %170 = vsyncpa [#allocation3], 1
    %171 = vsyncpa [#allocation5], 1

</llo_original>
